<compile_context>
chip_gen: v5e
topology: v5e:2x2
jax: 0.10.0
libtpu: 0.0.40
codegen_flags: <defaults>
</compile_context>

<pallas_src>
import functools

import jax
import jax.numpy as jnp
from jax.experimental import pallas as pl
from jax.experimental.pallas import tpu as pltpu


def _mlp3_mdn_kernel(x_ref, w1_ref, b1_ref, w2_ref, b2_ref, w3_ref, b3_ref,
                     wm_ref, bm_ref, out_ref, *, num_gaussians):
    """One batch tile: 3x(Linear+ReLU) -> MDN head -> fused (alpha|sigma|mu|pad)."""

    def dense(a, w_ref, b_ref):
        # Cast the activation to the weight dtype (no-op in f32 mode) so the
        # optional bf16 mode feeds bf16 x bf16 into the MXU; accumulate in f32.
        y = jnp.dot(a.astype(w_ref.dtype), w_ref[...],
                    preferred_element_type=jnp.float32)
        return y + b_ref[...]

    h = jnp.maximum(dense(x_ref[...], w1_ref, b1_ref), 0.0)
    h = jnp.maximum(dense(h, w2_ref, b2_ref), 0.0)
    h = jnp.maximum(dense(h, w3_ref, b3_ref), 0.0)
    # MDN pre-activations, (tb, mdn_pad) f32.  Padded weight/bias columns are
    # zero, so padded y columns are exactly 0.
    y = dense(h, wm_ref, bm_ref)

    n_g = num_gaussians
    col = jax.lax.broadcasted_iota(jnp.int32, y.shape, 1)
    is_alpha = col < n_g
    is_sigma = jnp.logical_and(col >= n_g, col < 2 * n_g)

    # Row-wise masked softmax over the alpha columns.  Softmax is shift
    # invariant, so this matches the PyTorch "subtract global max" variant.
    alpha_logits = jnp.where(is_alpha, y, -jnp.inf)
    row_max = jnp.max(alpha_logits, axis=1, keepdims=True)
    e = jnp.exp(alpha_logits - row_max)                # exactly 0 off alpha cols
    inv_denom = 1.0 / jnp.sum(e, axis=1, keepdims=True)  # exact normalization
    alpha_full = e * inv_denom

    # exp only sees the sigma columns (0 elsewhere) -> no spurious overflow on
    # large mu pre-activations.
    sigma_full = jnp.exp(jnp.where(is_sigma, y, 0.0)) + 1e-5

    # Single lane-dense full-block store (unmasked vst); padded columns carry
    # don't-care values and are sliced off in the wrapper.
    out_ref[...] = jnp.where(is_alpha, alpha_full,
                             jnp.where(is_sigma, sigma_full, y))


def _round_up(a, m):
    return (a + m - 1) // m * m


def _choose_batch_tile(B, block_batch):
    """Batch tile: big (amortize per-step overhead), >=2 grid steps when B
    allows (both v7x TensorCores), multiple of 128 for large B (full MXU-M
    passes on v5e), else multiple of 8 (sublane granularity)."""
    if B >= 2 * block_batch:
        return block_batch
    half = -(-B // 2)          # cdiv(B, 2)
    if half >= 128:
        tb = _round_up(half, 128)
    elif B >= 16:
        tb = _round_up(half, 8)
    else:
        tb = _round_up(max(B, 1), 8)
    return min(tb, block_batch)


def mlp3_mdn_forward(x, params, num_gaussians, output_dim, *,
                     block_batch=1024, matmul_dtype=None):
    """x: (B, input_dim) f32.  params: dict of pre-transposed (in, out) weights
    and (1, out) biases (natural, unpadded shapes).  Returns {'alpha','sigma','mu'}."""
    B, input_dim = x.shape
    n_g = num_gaussians
    mdn_out = (output_dim + 2) * n_g
    mdn_pad = _round_up(mdn_out, 128)   # lane-dense output / head-matmul width

    tb = _choose_batch_tile(B, block_batch)
    b_pad = _round_up(B, tb)
    if b_pad != B:
        x = jnp.pad(x, ((0, b_pad - B), (0, 0)))

    # Zero-pad the MDN head to the lane-dense width (padded y columns == 0).
    wm = jnp.pad(params["wm"], ((0, 0), (0, mdn_pad - mdn_out)))
    bm = jnp.pad(params["bm"], ((0, 0), (0, mdn_pad - mdn_out)))
    w1, b1, w2, b2, w3, b3 = (params["w1"], params["b1"], params["w2"],
                              params["b2"], params["w3"], params["b3"])
    if matmul_dtype is not None:
        # Optional bf16 MXU-input mode for v6e/v7x (biases/epilogue stay f32).
        x = x.astype(matmul_dtype)
        w1, w2, w3, wm = (w.astype(matmul_dtype) for w in (w1, w2, w3, wm))

    weights = (w1, b1, w2, b2, w3, b3, wm, bm)
    grid = (b_pad // tb,)

    in_specs = [pl.BlockSpec((tb, input_dim), lambda i: (i, 0))]
    # Weights/biases: full-array blocks, constant index_map -> fetched once and
    # VMEM-resident across all batch tiles.
    in_specs += [pl.BlockSpec(w.shape, lambda i: (0, 0)) for w in weights]
    out_specs = pl.BlockSpec((tb, mdn_pad), lambda i: (i, 0))
    # TODO(synk): if profiling at very large tb shows exposed x DMA, add
    # pipeline_mode=pl.Buffered(3) on in_specs[0] (low priority per review).

    mm_shapes = [(input_dim, w1.shape[1]), (w1.shape[1], w2.shape[1]),
                 (w2.shape[1], w3.shape[1]), (w3.shape[1], mdn_pad)]
    flops = 2 * b_pad * sum(a * b for a, b in mm_shapes)
    bytes_accessed = int(x.size * x.dtype.itemsize
                         + sum(int(w.size) * w.dtype.itemsize for w in weights)
                         + 4 * b_pad * mdn_pad)
    transcendentals = 2 * b_pad * mdn_pad

    fused = pl.pallas_call(
        functools.partial(_mlp3_mdn_kernel, num_gaussians=n_g),
        out_shape=jax.ShapeDtypeStruct((b_pad, mdn_pad), jnp.float32),
        grid=grid,
        in_specs=in_specs,
        out_specs=out_specs,
        compiler_params=pltpu.CompilerParams(
            dimension_semantics=("parallel",)),
        cost_estimate=pl.CostEstimate(flops=flops,
                                      transcendentals=transcendentals,
                                      bytes_accessed=bytes_accessed),
    )(x, *weights)

    return {"alpha": fused[:B, :n_g],
            "sigma": fused[:B, n_g:2 * n_g],
            "mu": fused[:B, 2 * n_g:mdn_out]}


def make_params(key, input_dim, hidden_dims, output_dim, num_gaussians):
    """Deterministic synthetic init (xavier-normal weights, small biases).
    Weights are stored pre-transposed to (in_dim, out_dim); biases are (1, out).

    NOTE: mirrors the PyTorch module exactly -- its MDN head is built with
    input dim hidden_dims[0] (MixtureDensity(hidden_dims[0], ...)), so the
    forward requires hidden_dims[2] == hidden_dims[0], as in the original.
    """
    assert hidden_dims[2] == hidden_dims[0], \
        "MLP3MDN (as defined in PyTorch) requires hidden_dims[2] == hidden_dims[0]"
    dims_in = (input_dim, hidden_dims[0], hidden_dims[1], hidden_dims[0])
    dims_out = (hidden_dims[0], hidden_dims[1], hidden_dims[2],
                (output_dim + 2) * num_gaussians)
    names = ("1", "2", "3", "m")
    params = {}
    for name, din, dout in zip(names, dims_in, dims_out):
        key, kw, kb = jax.random.split(key, 3)
        std = jnp.sqrt(2.0 / (din + dout))  # xavier_normal, gain=1
        params["w" + name] = (std * jax.random.normal(kw, (din, dout))).astype(jnp.float32)
        params["b" + name] = (0.01 * jax.random.normal(kb, (1, dout))).astype(jnp.float32)
    return params


def reference_forward(x, params, num_gaussians):
    """Pure-JAX reference mirroring the PyTorch forward."""
    hp = jax.lax.Precision.HIGHEST
    h = jnp.maximum(jnp.dot(x, params["w1"], precision=hp) + params["b1"], 0.0)
    h = jnp.maximum(jnp.dot(h, params["w2"], precision=hp) + params["b2"], 0.0)
    h = jnp.maximum(jnp.dot(h, params["w3"], precision=hp) + params["b3"], 0.0)
    y = jnp.dot(h, params["wm"], precision=hp) + params["bm"]
    n_g = num_gaussians
    logits = y[:, :n_g] - jnp.max(y[:, :n_g])   # global max, like the PyTorch code
    alpha = jax.nn.softmax(logits, axis=1)
    sigma = jnp.exp(y[:, n_g:2 * n_g]) + 1e-5
    mu = y[:, 2 * n_g:]
    return {"alpha": alpha, "sigma": sigma, "mu": mu}


if __name__ == "__main__":
    input_dim = 16
    hidden_dims = (32, 32, 32)
    output_dim = 4
    num_gaussians = 4

    key = jax.random.PRNGKey(0)
    key, kp = jax.random.split(key)
    params = make_params(kp, input_dim, hidden_dims, output_dim, num_gaussians)

    # B=8  : tiny single-tile grid (tb=8).
    # B=40 : multi-step grid with batch padding (tb=24 -> grid=(2,), pad to 48).
    # B=400: 128-multiple tiles, 2 parallel grid steps (tb=256 -> both v7x TCs).
    for B in (8, 40, 400):
        key, kx = jax.random.split(key)
        x = jax.random.normal(kx, (B, input_dim), dtype=jnp.float32)

        out = mlp3_mdn_forward(x, params, num_gaussians, output_dim)
        out = jax.tree_util.tree_map(jax.block_until_ready, out)

        ref = reference_forward(x, params, num_gaussians)
        for k in ("alpha", "sigma", "mu"):
            assert out[k].shape == ref[k].shape, (k, out[k].shape, ref[k].shape)
            assert jnp.allclose(out[k], ref[k], rtol=2e-3, atol=1e-3), (k, B)

    print("KERNEL_OK")
</pallas_src>

<mosaic_0001>
module attributes {stable_mosaic.version = 11 : i64} {
  func.func @_mlp3_mdn_kernel(%arg0: i32, %arg1: memref<8x16xf32, #tpu.memory_space<vmem>>, %arg2: memref<16x32xf32, #tpu.memory_space<vmem>>, %arg3: memref<1x32xf32, #tpu.memory_space<vmem>>, %arg4: memref<32x32xf32, #tpu.memory_space<vmem>>, %arg5: memref<1x32xf32, #tpu.memory_space<vmem>>, %arg6: memref<32x32xf32, #tpu.memory_space<vmem>>, %arg7: memref<1x32xf32, #tpu.memory_space<vmem>>, %arg8: memref<32x128xf32, #tpu.memory_space<vmem>>, %arg9: memref<1x128xf32, #tpu.memory_space<vmem>>, %arg10: memref<8x128xf32, #tpu.memory_space<vmem>>) attributes {dimension_semantics = [#tpu.dimension_semantics<parallel>], iteration_bounds = array<i64: 1>, scalar_prefetch = 0 : i64, scratch_operands = 0 : i64, tpu.core_type = #tpu.core_type<tc>, window_params = [{transform_indices = @transform_0, window_bounds = array<i64: 8, 16>}, {pipeline_mode = #tpu.pipeline_mode<synchronous>, transform_indices = @transform_1, window_bounds = array<i64: 16, 32>}, {pipeline_mode = #tpu.pipeline_mode<synchronous>, transform_indices = @transform_2, window_bounds = array<i64: 1, 32>}, {pipeline_mode = #tpu.pipeline_mode<synchronous>, transform_indices = @transform_3, window_bounds = array<i64: 32, 32>}, {pipeline_mode = #tpu.pipeline_mode<synchronous>, transform_indices = @transform_4, window_bounds = array<i64: 1, 32>}, {pipeline_mode = #tpu.pipeline_mode<synchronous>, transform_indices = @transform_5, window_bounds = array<i64: 32, 32>}, {pipeline_mode = #tpu.pipeline_mode<synchronous>, transform_indices = @transform_6, window_bounds = array<i64: 1, 32>}, {pipeline_mode = #tpu.pipeline_mode<synchronous>, transform_indices = @transform_7, window_bounds = array<i64: 32, 128>}, {pipeline_mode = #tpu.pipeline_mode<synchronous>, transform_indices = @transform_8, window_bounds = array<i64: 1, 128>}, {transform_indices = @transform_9, window_bounds = array<i64: 8, 128>}]} {
    %c0 = arith.constant 0 : index
    %c0_0 = arith.constant 0 : index
    %0 = vector.load %arg1[%c0, %c0_0] : memref<8x16xf32, #tpu.memory_space<vmem>>, vector<8x16xf32>
    %c0_1 = arith.constant 0 : index
    %c0_2 = arith.constant 0 : index
    %1 = vector.load %arg2[%c0_1, %c0_2] : memref<16x32xf32, #tpu.memory_space<vmem>>, vector<16x32xf32>
    %cst = arith.constant dense<0.000000e+00> : vector<8x32xf32>
    %2 = tpu.matmul %0, %1, %cst {dimension_numbers = #tpu.dot_dimension_numbers<[1], [0], [0], [1], [0, 0, 1, 1], [], []>} : vector<8x16xf32>, vector<16x32xf32>, vector<8x32xf32> -> vector<8x32xf32>
    %c0_3 = arith.constant 0 : index
    %c0_4 = arith.constant 0 : index
    %3 = vector.load %arg3[%c0_3, %c0_4] : memref<1x32xf32, #tpu.memory_space<vmem>>, vector<1x32xf32>
    %4 = vector.broadcast %3 : vector<1x32xf32> to vector<8x32xf32>
    %5 = arith.addf %2, %4 : vector<8x32xf32>
    %cst_5 = arith.constant 0.000000e+00 : f32
    %6 = vector.broadcast %cst_5 : f32 to vector<8x32xf32>
    %7 = arith.maximumf %5, %6 : vector<8x32xf32>
    %c0_6 = arith.constant 0 : index
    %c0_7 = arith.constant 0 : index
    %8 = vector.load %arg4[%c0_6, %c0_7] : memref<32x32xf32, #tpu.memory_space<vmem>>, vector<32x32xf32>
    %cst_8 = arith.constant dense<0.000000e+00> : vector<8x32xf32>
    %9 = tpu.matmul %7, %8, %cst_8 {dimension_numbers = #tpu.dot_dimension_numbers<[1], [0], [0], [1], [0, 0, 1, 1], [], []>} : vector<8x32xf32>, vector<32x32xf32>, vector<8x32xf32> -> vector<8x32xf32>
    %c0_9 = arith.constant 0 : index
    %c0_10 = arith.constant 0 : index
    %10 = vector.load %arg5[%c0_9, %c0_10] : memref<1x32xf32, #tpu.memory_space<vmem>>, vector<1x32xf32>
    %11 = vector.broadcast %10 : vector<1x32xf32> to vector<8x32xf32>
    %12 = arith.addf %9, %11 : vector<8x32xf32>
    %cst_11 = arith.constant 0.000000e+00 : f32
    %13 = vector.broadcast %cst_11 : f32 to vector<8x32xf32>
    %14 = arith.maximumf %12, %13 : vector<8x32xf32>
    %c0_12 = arith.constant 0 : index
    %c0_13 = arith.constant 0 : index
    %15 = vector.load %arg6[%c0_12, %c0_13] : memref<32x32xf32, #tpu.memory_space<vmem>>, vector<32x32xf32>
    %cst_14 = arith.constant dense<0.000000e+00> : vector<8x32xf32>
    %16 = tpu.matmul %14, %15, %cst_14 {dimension_numbers = #tpu.dot_dimension_numbers<[1], [0], [0], [1], [0, 0, 1, 1], [], []>} : vector<8x32xf32>, vector<32x32xf32>, vector<8x32xf32> -> vector<8x32xf32>
    %c0_15 = arith.constant 0 : index
    %c0_16 = arith.constant 0 : index
    %17 = vector.load %arg7[%c0_15, %c0_16] : memref<1x32xf32, #tpu.memory_space<vmem>>, vector<1x32xf32>
    %18 = vector.broadcast %17 : vector<1x32xf32> to vector<8x32xf32>
    %19 = arith.addf %16, %18 : vector<8x32xf32>
    %cst_17 = arith.constant 0.000000e+00 : f32
    %20 = vector.broadcast %cst_17 : f32 to vector<8x32xf32>
    %21 = arith.maximumf %19, %20 : vector<8x32xf32>
    %c0_18 = arith.constant 0 : index
    %c0_19 = arith.constant 0 : index
    %22 = vector.load %arg8[%c0_18, %c0_19] : memref<32x128xf32, #tpu.memory_space<vmem>>, vector<32x128xf32>
    %cst_20 = arith.constant dense<0.000000e+00> : vector<8x128xf32>
    %23 = tpu.matmul %21, %22, %cst_20 {dimension_numbers = #tpu.dot_dimension_numbers<[1], [0], [0], [1], [0, 0, 1, 1], [], []>} : vector<8x32xf32>, vector<32x128xf32>, vector<8x128xf32> -> vector<8x128xf32>
    %c0_21 = arith.constant 0 : index
    %c0_22 = arith.constant 0 : index
    %24 = vector.load %arg9[%c0_21, %c0_22] : memref<1x128xf32, #tpu.memory_space<vmem>>, vector<1x128xf32>
    %25 = vector.broadcast %24 : vector<1x128xf32> to vector<8x128xf32>
    %26 = arith.addf %23, %25 : vector<8x128xf32>
    %27 = tpu.iota {dimensions = array<i32: 1>} : vector<8x128xi32>
    %c4_i32 = arith.constant 4 : i32
    %28 = vector.broadcast %c4_i32 : i32 to vector<8x128xi32>
    %29 = arith.cmpi slt, %27, %28 : vector<8x128xi32>
    %c4_i32_23 = arith.constant 4 : i32
    %30 = vector.broadcast %c4_i32_23 : i32 to vector<8x128xi32>
    %31 = arith.cmpi sge, %27, %30 : vector<8x128xi32>
    %c8_i32 = arith.constant 8 : i32
    %32 = vector.broadcast %c8_i32 : i32 to vector<8x128xi32>
    %33 = arith.cmpi slt, %27, %32 : vector<8x128xi32>
    %34 = arith.andi %31, %33 : vector<8x128xi1>
    %cst_24 = arith.constant 0xFF800000 : f32
    %35 = vector.broadcast %cst_24 : f32 to vector<8x128xf32>
    %36 = arith.select %29, %26, %35 : vector<8x128xi1>, vector<8x128xf32>
    %cst_25 = arith.constant dense<0xFF800000> : vector<8xf32>
    %37 = vector.multi_reduction <maximumf>, %36, %cst_25 [1] : vector<8x128xf32> to vector<8xf32>
    %38 = vector.shape_cast %37 : vector<8xf32> to vector<8x1xf32>
    %39 = vector.broadcast %38 : vector<8x1xf32> to vector<8x128xf32>
    %40 = arith.subf %36, %39 : vector<8x128xf32>
    %41 = math.exp %40 : vector<8x128xf32>
    %cst_26 = arith.constant dense<0.000000e+00> : vector<8xf32>
    %42 = vector.multi_reduction <add>, %41, %cst_26 [1] : vector<8x128xf32> to vector<8xf32>
    %43 = vector.shape_cast %42 : vector<8xf32> to vector<8x1xf32>
    %cst_27 = arith.constant 1.000000e+00 : f32
    %44 = vector.broadcast %cst_27 : f32 to vector<8x1xf32>
    %45 = arith.divf %44, %43 : vector<8x1xf32>
    %46 = vector.broadcast %45 : vector<8x1xf32> to vector<8x128xf32>
    %47 = arith.mulf %41, %46 : vector<8x128xf32>
    %cst_28 = arith.constant 0.000000e+00 : f32
    %48 = vector.broadcast %cst_28 : f32 to vector<8x128xf32>
    %49 = arith.select %34, %26, %48 : vector<8x128xi1>, vector<8x128xf32>
    %50 = math.exp %49 : vector<8x128xf32>
    %cst_29 = arith.constant 9.99999974E-6 : f32
    %51 = vector.broadcast %cst_29 : f32 to vector<8x128xf32>
    %52 = arith.addf %50, %51 : vector<8x128xf32>
    %53 = arith.select %34, %52, %26 : vector<8x128xi1>, vector<8x128xf32>
    %54 = arith.select %29, %47, %53 : vector<8x128xi1>, vector<8x128xf32>
    %c0_30 = arith.constant 0 : index
    %c0_31 = arith.constant 0 : index
    %55 = vector.load %arg10[%c0_30, %c0_31] : memref<8x128xf32, #tpu.memory_space<vmem>>, vector<8x128xf32>
    tpu.vector_store %arg10[%c0_30, %c0_31], %54 {strides = array<i32>} : memref<8x128xf32, #tpu.memory_space<vmem>>, vector<8x128xf32>,
    return
  }
  func.func @transform_0(%arg0: i32) -> (i32, i32) {
    %c0_i32 = arith.constant 0 : i32
    %c0_i32_0 = arith.constant 0 : i32
    return %arg0, %c0_i32 : i32, i32
  }
  func.func @transform_1(%arg0: i32) -> (i32, i32) {
    %c0_i32 = arith.constant 0 : i32
    %c0_i32_0 = arith.constant 0 : i32
    %c0_i32_1 = arith.constant 0 : i32
    return %c0_i32, %c0_i32_0 : i32, i32
  }
  func.func @transform_2(%arg0: i32) -> (i32, i32) {
    %c0_i32 = arith.constant 0 : i32
    %c0_i32_0 = arith.constant 0 : i32
    %c0_i32_1 = arith.constant 0 : i32
    return %c0_i32, %c0_i32_0 : i32, i32
  }
  func.func @transform_3(%arg0: i32) -> (i32, i32) {
    %c0_i32 = arith.constant 0 : i32
    %c0_i32_0 = arith.constant 0 : i32
    %c0_i32_1 = arith.constant 0 : i32
    return %c0_i32, %c0_i32_0 : i32, i32
  }
  func.func @transform_4(%arg0: i32) -> (i32, i32) {
    %c0_i32 = arith.constant 0 : i32
    %c0_i32_0 = arith.constant 0 : i32
    %c0_i32_1 = arith.constant 0 : i32
    return %c0_i32, %c0_i32_0 : i32, i32
  }
  func.func @transform_5(%arg0: i32) -> (i32, i32) {
    %c0_i32 = arith.constant 0 : i32
    %c0_i32_0 = arith.constant 0 : i32
    %c0_i32_1 = arith.constant 0 : i32
    return %c0_i32, %c0_i32_0 : i32, i32
  }
  func.func @transform_6(%arg0: i32) -> (i32, i32) {
    %c0_i32 = arith.constant 0 : i32
    %c0_i32_0 = arith.constant 0 : i32
    %c0_i32_1 = arith.constant 0 : i32
    return %c0_i32, %c0_i32_0 : i32, i32
  }
  func.func @transform_7(%arg0: i32) -> (i32, i32) {
    %c0_i32 = arith.constant 0 : i32
    %c0_i32_0 = arith.constant 0 : i32
    %c0_i32_1 = arith.constant 0 : i32
    return %c0_i32, %c0_i32_0 : i32, i32
  }
  func.func @transform_8(%arg0: i32) -> (i32, i32) {
    %c0_i32 = arith.constant 0 : i32
    %c0_i32_0 = arith.constant 0 : i32
    %c0_i32_1 = arith.constant 0 : i32
    return %c0_i32, %c0_i32_0 : i32, i32
  }
  func.func @transform_9(%arg0: i32) -> (i32, i32) {
    %c0_i32 = arith.constant 0 : i32
    %c0_i32_0 = arith.constant 0 : i32
    return %arg0, %c0_i32 : i32, i32
  }
}

</mosaic_0001>

<llo_original>
// kernel: tpu_custom_call.1
$region0: #{tpu_custom_call.1}
  #allocation0 [shape = 'u32[]', space=smem, size = 0x4, offset = 0x4, fixed_abs, tag = 'smem constant byte address 0x4 - core index']
  #allocation1 [shape = 'u32[72,128]{1,0:T(1,128)}', space=vmem, size = 0x9000, scoped, tag = 'internal scratch']
  %s0 = inlined_call_operand.hbm [shape: f32[8,16], index: 0, kind: input, shape index: {}]
  %s1 = inlined_call_operand.hbm [shape: f32[16,32], index: 1, kind: input, shape index: {}]
  %s2 = inlined_call_operand.vmem [shape: f32[1,32], index: 2, kind: input, shape index: {}]
  %s3 = inlined_call_operand.hbm [shape: f32[32,32], index: 3, kind: input, shape index: {}]
  %s4 = inlined_call_operand.vmem [shape: f32[1,32], index: 4, kind: input, shape index: {}]
  %s5 = inlined_call_operand.hbm [shape: f32[32,32], index: 5, kind: input, shape index: {}]
  %s6 = inlined_call_operand.vmem [shape: f32[1,32], index: 6, kind: input, shape index: {}]
  %s7 = inlined_call_operand.hbm [shape: f32[32,128], index: 7, kind: input, shape index: {}]
  %s8 = inlined_call_operand.vmem [shape: f32[1,128], index: 8, kind: input, shape index: {}]
  %s9 = inlined_call_operand.hbm [shape: f32[8,128], index: 9, kind: output, shape index: {}]
  %s10 = sld [smem:[#allocation0]]
  $region66: #{tpu_custom_call.1} parent=0
    _
  %s12 = ssub.s32 1, %s10
  %s13 = scalar_select 0, %s12, %s10
  $region1: #{tpu_custom_call.1} parent=0
    #allocation2 [shape = 'u8[4096]{0}', space=vmem, size = 0x1000, scoped, tag = 'input window, operand 0, single buffered']
    #allocation3 [shape = 's32[1]{0}', space=sflag, size = 0x4, scoped, tag = 'scoped memory for tpu_custom_call.1']
    #allocation4 [shape = 's32[1]{0}', space=sflag, size = 0x4, scoped, tag = 'scoped memory for tpu_custom_call.1']
    #allocation5 [shape = 'u8[8192]{0}', space=vmem, size = 0x2000, scoped, tag = 'input window, operand 1, single buffered']
    #allocation6 [shape = 's32[1]{0}', space=sflag, size = 0x4, scoped, tag = 'scoped memory for tpu_custom_call.1']
    #allocation7 [shape = 'u8[16384]{0}', space=vmem, size = 0x4000, scoped, tag = 'input window, operand 3, single buffered']
    #allocation8 [shape = 'u8[16384]{0}', space=vmem, size = 0x4000, scoped, tag = 'input window, operand 5, single buffered']
    #allocation9 [shape = 's32[1]{0}', space=sflag, size = 0x4, scoped, tag = 'scoped memory for tpu_custom_call.1']
    #allocation10 [shape = 'u8[16384]{0}', space=vmem, size = 0x4000, scoped, tag = 'input window, operand 7, single buffered']
    #allocation11 [shape = 'u8[4096]{0}', space=vmem, size = 0x1000, scoped, tag = 'output window, operand 0, single buffered']
    %14 = vsyncpa [#allocation3], 0
    %15 = vsyncpa [#allocation6], 0
    %16 = vsyncpa [#allocation9], 0
    %17 = vsyncpa [#allocation4], 0
    // Predicated region
    $region2: #{tpu_custom_call.1} parent=1 // pred_check
      _
    $region3: #{tpu_custom_call.1} parent=1 // pred_check_branch
      %19 = sbr.rel (0) target = $region5
    $region4: #{tpu_custom_call.1} parent=1 // pred_region
      %21 = vsyncadd [#allocation3], 0
      %s23 = sshll.u32 %s0, 4
      %s24 = int_to_ptr.hbm [resolvable:$true] %s23
      %s25 = sshll.u32 [#allocation2], 4
      %s26 = int_to_ptr.vmem [resolvable:$true] %s25
      %28 = dma.hbm_to_vmem [thread:$0]  %s24, 128, %s26, [#allocation3]
    $region5: #{tpu_custom_call.1} parent=1 // pred_fallthru
      _
    // Predicated region
    $region6: #{tpu_custom_call.1} parent=1 // pred_check
      _
    $region7: #{tpu_custom_call.1} parent=1 // pred_check_branch
      %30 = sbr.rel (0) target = $region9
    $region8: #{tpu_custom_call.1} parent=1 // pred_region
      %32 = vsyncadd [#allocation6], 0
      %s33 = sshll.u32 %s1, 4
      %s34 = int_to_ptr.hbm [resolvable:$true] %s33
      %s35 = sshll.u32 [#allocation5], 4
      %s36 = int_to_ptr.vmem [resolvable:$true] %s35
      %41 = dma.hbm_to_vmem [thread:$0]  %s34, 256, %s36, [#allocation6], 128, 128, 8
    $region9: #{tpu_custom_call.1} parent=1 // pred_fallthru
      _
    // Predicated region
    $region10: #{tpu_custom_call.1} parent=1 // pred_check
      _
    $region11: #{tpu_custom_call.1} parent=1 // pred_check_branch
      %43 = sbr.rel (0) target = $region13
    $region12: #{tpu_custom_call.1} parent=1 // pred_region
      _
    $region13: #{tpu_custom_call.1} parent=1 // pred_fallthru
      _
    // Predicated region
    $region14: #{tpu_custom_call.1} parent=1 // pred_check
      _
    $region15: #{tpu_custom_call.1} parent=1 // pred_check_branch
      %45 = sbr.rel (0) target = $region17
    $region16: #{tpu_custom_call.1} parent=1 // pred_region
      %47 = vsyncadd [#allocation6], 0
      %s48 = sshll.u32 %s3, 4
      %s49 = int_to_ptr.hbm [resolvable:$true] %s48
      %s50 = sshll.u32 [#allocation7], 4
      %s51 = int_to_ptr.vmem [resolvable:$true] %s50
      %56 = dma.hbm_to_vmem [thread:$0]  %s49, 512, %s51, [#allocation6], 128, 128, 8
    $region17: #{tpu_custom_call.1} parent=1 // pred_fallthru
      _
    // Predicated region
    $region18: #{tpu_custom_call.1} parent=1 // pred_check
      _
    $region19: #{tpu_custom_call.1} parent=1 // pred_check_branch
      %58 = sbr.rel (0) target = $region21
    $region20: #{tpu_custom_call.1} parent=1 // pred_region
      _
    $region21: #{tpu_custom_call.1} parent=1 // pred_fallthru
      _
    // Predicated region
    $region22: #{tpu_custom_call.1} parent=1 // pred_check
      _
    $region23: #{tpu_custom_call.1} parent=1 // pred_check_branch
      %60 = sbr.rel (0) target = $region25
    $region24: #{tpu_custom_call.1} parent=1 // pred_region
      %62 = vsyncadd [#allocation9], 0
      %s63 = sshll.u32 %s5, 4
      %s64 = int_to_ptr.hbm [resolvable:$true] %s63
      %s65 = sshll.u32 [#allocation8], 4
      %s66 = int_to_ptr.vmem [resolvable:$true] %s65
      %71 = dma.hbm_to_vmem [thread:$0]  %s64, 512, %s66, [#allocation9], 128, 128, 8
    $region25: #{tpu_custom_call.1} parent=1 // pred_fallthru
      _
    // Predicated region
    $region26: #{tpu_custom_call.1} parent=1 // pred_check
      _
    $region27: #{tpu_custom_call.1} parent=1 // pred_check_branch
      %73 = sbr.rel (0) target = $region29
    $region28: #{tpu_custom_call.1} parent=1 // pred_region
      _
    $region29: #{tpu_custom_call.1} parent=1 // pred_fallthru
      _
    // Predicated region
    $region30: #{tpu_custom_call.1} parent=1 // pred_check
      _
    $region31: #{tpu_custom_call.1} parent=1 // pred_check_branch
      %75 = sbr.rel (0) target = $region33
    $region32: #{tpu_custom_call.1} parent=1 // pred_region
      %77 = vsyncadd [#allocation9], 0
      %s78 = sshll.u32 %s7, 4
      %s79 = int_to_ptr.hbm [resolvable:$true] %s78
      %s80 = sshll.u32 [#allocation10], 4
      %s81 = int_to_ptr.vmem [resolvable:$true] %s80
      %86 = dma.hbm_to_vmem [thread:$0]  %s79, 512, %s81, [#allocation9], 128, 128, 8
    $region33: #{tpu_custom_call.1} parent=1 // pred_fallthru
      _
    // Predicated region
    $region34: #{tpu_custom_call.1} parent=1 // pred_check
      _
    $region35: #{tpu_custom_call.1} parent=1 // pred_check_branch
      %88 = sbr.rel (0) target = $region37
    $region36: #{tpu_custom_call.1} parent=1 // pred_region
      _
    $region37: #{tpu_custom_call.1} parent=1 // pred_fallthru
      _
    // Predicated region
    $region38: #{tpu_custom_call.1} parent=1 // pred_check
      _
    $region39: #{tpu_custom_call.1} parent=1 // pred_check_branch
      %90 = sbr.rel (0) target = $region41
    $region40: #{tpu_custom_call.1} parent=1 // pred_region
      %92 = dma.done [#allocation3], 128
    $region41: #{tpu_custom_call.1} parent=1 // pred_fallthru
      _
    // Predicated region
    $region42: #{tpu_custom_call.1} parent=1 // pred_check
      _
    $region43: #{tpu_custom_call.1} parent=1 // pred_check_branch
      %94 = sbr.rel (0) target = $region45
    $region44: #{tpu_custom_call.1} parent=1 // pred_region
      %96 = dma.done [#allocation6], 256
    $region45: #{tpu_custom_call.1} parent=1 // pred_fallthru
      _
    // Predicated region
    $region46: #{tpu_custom_call.1} parent=1 // pred_check
      _
    $region47: #{tpu_custom_call.1} parent=1 // pred_check_branch
      %98 = sbr.rel (0) target = $region49
    $region48: #{tpu_custom_call.1} parent=1 // pred_region
      %100 = dma.done [#allocation6], 512
    $region49: #{tpu_custom_call.1} parent=1 // pred_fallthru
      _
    // Predicated region
    $region50: #{tpu_custom_call.1} parent=1 // pred_check
      _
    $region51: #{tpu_custom_call.1} parent=1 // pred_check_branch
      %102 = sbr.rel (0) target = $region53
    $region52: #{tpu_custom_call.1} parent=1 // pred_region
      %104 = dma.done [#allocation9], 512
    $region53: #{tpu_custom_call.1} parent=1 // pred_fallthru
      _
    // Predicated region
    $region54: #{tpu_custom_call.1} parent=1 // pred_check
      _
    $region55: #{tpu_custom_call.1} parent=1 // pred_check_branch
      %106 = sbr.rel (0) target = $region57
    $region56: #{tpu_custom_call.1} parent=1 // pred_region
      %108 = dma.done [#allocation9], 512
    $region57: #{tpu_custom_call.1} parent=1 // pred_fallthru
      _
    %v109 = vld [vmem:[#allocation2] sm:$0xff]
    %v110 = vld [vmem:[#allocation5] sm:$0xff]
    %v111 = vld [vmem:[#allocation5 + $0x8] sm:$0xff]
    %v112 = vld [vmem:[%s2] sm:$0x1]
    %v114 = vperm.slane %v112, 0
    %vm116 = vcmask 130048
    %v118 = vsel %vm116, %v109, 0
    %120 = vmatpush.msra.mxu0 0.0
    %121 = vmatpush.msra.mxu0 0.0
    %122 = vmatpush.msra.mxu0 0.0
    %123 = vmatpush.msra.mxu0 0.0
    %124 = vmatpush.msra.mxu0 0.0
    %125 = vmatpush.msra.mxu0 0.0
    %126 = vmatpush.msra.mxu0 0.0
    %127 = vmatpush.msra.mxu0 0.0
    %128 = vmatpush.msra.mxu0 0.0
    %129 = vmatpush.msra.mxu0 0.0
    %130 = vmatpush.msra.mxu0 0.0
    %131 = vmatpush.msra.mxu0 0.0
    %132 = vmatpush.msra.mxu0 0.0
    %133 = vmatpush.msra.mxu0 0.0
    %134 = vmatpush.msra.mxu0 %v111
    %135 = vmatpush.msra.mxu0 %v110
    %136 = vmatmul.f32.gmra.mxu0 %v118
    %v137 = vpop.f32.mrf.mxu0
    %v138 = vadd.f32 %v114, %v137
    %139 = vdwg.mxu0
    %v140 = vmax.f32 %v138, 0.0
    %v141 = vld [vmem:[#allocation7] sm:$0xff]
    %v142 = vld [vmem:[#allocation7 + $0x8] sm:$0xff]
    %v143 = vld [vmem:[#allocation7 + $0x10] sm:$0xff]
    %v144 = vld [vmem:[#allocation7 + $0x18] sm:$0xff]
    %v145 = vld [vmem:[%s4] sm:$0x1]
    %v147 = vperm.slane %v145, 0
    %vm149 = vcmask 261120
    %v151 = vsel %vm149, %v140, 0
    %153 = vmatpush.msra.mxu0 0.0
    %154 = vmatpush.msra.mxu0 0.0
    %155 = vmatpush.msra.mxu0 0.0
    %156 = vmatpush.msra.mxu0 0.0
    %157 = vmatpush.msra.mxu0 0.0
    %158 = vmatpush.msra.mxu0 0.0
    %159 = vmatpush.msra.mxu0 0.0
    %160 = vmatpush.msra.mxu0 0.0
    %161 = vmatpush.msra.mxu0 0.0
    %162 = vmatpush.msra.mxu0 0.0
    %163 = vmatpush.msra.mxu0 0.0
    %164 = vmatpush.msra.mxu0 0.0
    %165 = vmatpush.msra.mxu0 %v144
    %166 = vmatpush.msra.mxu0 %v143
    %167 = vmatpush.msra.mxu0 %v142
    %168 = vmatpush.msra.mxu0 %v141
    %169 = vmatmul.f32.gmra.mxu0 %v151
    %v170 = vpop.f32.mrf.mxu0
    %v171 = vadd.f32 %v147, %v170
    %172 = vdwg.mxu0
    %v173 = vmax.f32 %v171, 0.0
    %v174 = vld [vmem:[#allocation8] sm:$0xff]
    %v175 = vld [vmem:[#allocation8 + $0x8] sm:$0xff]
    %v176 = vld [vmem:[#allocation8 + $0x10] sm:$0xff]
    %v177 = vld [vmem:[#allocation8 + $0x18] sm:$0xff]
    %v178 = vld [vmem:[%s6] sm:$0x1]
    %v180 = vperm.slane %v178, 0
    %v183 = vsel %vm149, %v173, 0
    %185 = vmatpush.msra.mxu0 0.0
    %186 = vmatpush.msra.mxu0 0.0
    %187 = vmatpush.msra.mxu0 0.0
    %188 = vmatpush.msra.mxu0 0.0
    %189 = vmatpush.msra.mxu0 0.0
    %190 = vmatpush.msra.mxu0 0.0
    %191 = vmatpush.msra.mxu0 0.0
    %192 = vmatpush.msra.mxu0 0.0
    %193 = vmatpush.msra.mxu0 0.0
    %194 = vmatpush.msra.mxu0 0.0
    %195 = vmatpush.msra.mxu0 0.0
    %196 = vmatpush.msra.mxu0 0.0
    %197 = vmatpush.msra.mxu0 %v177
    %198 = vmatpush.msra.mxu0 %v176
    %199 = vmatpush.msra.mxu0 %v175
    %200 = vmatpush.msra.mxu0 %v174
    %201 = vmatmul.f32.gmra.mxu0 %v183
    %v202 = vpop.f32.mrf.mxu0
    %v203 = vadd.f32 %v180, %v202
    %204 = vdwg.mxu0
    %v205 = vmax.f32 %v203, 0.0
    %v206 = vld [vmem:[#allocation10] sm:$0xff]
    %v207 = vld [vmem:[#allocation10 + $0x8] sm:$0xff]
    %v208 = vld [vmem:[#allocation10 + $0x10] sm:$0xff]
    %v209 = vld [vmem:[#allocation10 + $0x18] sm:$0xff]
    %v210 = vld [vmem:[%s8] sm:$0x1]
    %v212 = vperm.slane %v210, 0
    %v215 = vsel %vm149, %v205, 0
    %217 = vmatpush.msra.mxu0 0.0
    %218 = vmatpush.msra.mxu0 0.0
    %219 = vmatpush.msra.mxu0 0.0
    %220 = vmatpush.msra.mxu0 0.0
    %221 = vmatpush.msra.mxu0 0.0
    %222 = vmatpush.msra.mxu0 0.0
    %223 = vmatpush.msra.mxu0 0.0
    %224 = vmatpush.msra.mxu0 0.0
    %225 = vmatpush.msra.mxu0 0.0
    %226 = vmatpush.msra.mxu0 0.0
    %227 = vmatpush.msra.mxu0 0.0
    %228 = vmatpush.msra.mxu0 0.0
    %229 = vmatpush.msra.mxu0 %v209
    %230 = vmatpush.msra.mxu0 %v208
    %231 = vmatpush.msra.mxu0 %v207
    %232 = vmatpush.msra.mxu0 %v206
    %233 = vmatmul.f32.gmra.mxu0 %v215
    %v234 = vpop.f32.mrf.mxu0
    %v235 = vadd.f32 %v212, %v234
    %236 = vdwg.mxu0
    %v237 = vlaneseq
    %v238 = vand.u32 %v237, 127
    %vm239 = vcmp.lt.s32.totalorder %v238, 4
    %vm240 = vcmp.ge.s32.totalorder %v238, 4
    %vm241 = vcmp.lt.s32.totalorder %v238, 8
    %vm242 = vmand %vm240, %vm241
    %v243 = vsel %vm239, %v235, -inf
    %244 = vmax.xlane.f32.xlu0 %v243
    %v245 = vpop.xlane.xlu0 %244
    %v246 = vsub.f32 %v243, %v245
    %v247 = vmul.f32 %v246, 1.442695
    %v248 = vpow.pop %v247
    %249 = vadd.xlane.f32.xlu0 %v248
    %v250 = vpop.xlane.xlu0 %249
    %v251 = vrcp.pop %v250
    %v252 = vmul.f32 %v250, %v251
    %v253 = vsub.f32 1.0, %v252
    %v254 = vmul.f32 %v251, %v253
    %v255 = vadd.f32 %v251, %v254
    %vm256 = vweird.f32 %v250
    %vm257 = vweird.f32 %v251
    %vm258 = vmor %vm256, %vm257
    %v259 = vsel %vm258, %v251, %v255
    %v260 = vand.u32 2147483647, %v250
    %vm261 = vcmp.eq.f32.partialorder %v260, 8.507059e+37
    %v262 = vand.u32 %v250, 2147483648
    %v263 = vor.u32 1.1754944e-38, %v262
    %v264 = vsel %vm261, %v263, %v259
    %v265 = vmul.f32 1.0, %v264
    %v266 = vmul.f32 %v248, %v265
    %v267 = vsel %vm242, %v235, 0.0
    %v268 = vmul.f32 %v267, 1.442695
    %v269 = vpow.pop %v268
    %v270 = vadd.f32 %v269, 1e-05
    %v271 = vsel %vm242, %v270, %v235
    %v272 = vsel %vm239, %v266, %v271
    %273 = vst [vmem:[#allocation11] sm:$0xff] %v272
    // Predicated region
    $region58: #{tpu_custom_call.1} parent=1 // pred_check
      _
    $region59: #{tpu_custom_call.1} parent=1 // pred_check_branch
      %275 = sbr.rel (0) target = $region61
    $region60: #{tpu_custom_call.1} parent=1 // pred_region
      %277 = vsyncadd [#allocation4], 0
      %s279 = sshll.u32 [#allocation11], 4
      %s280 = int_to_ptr.vmem [resolvable:$true] %s279
      %s281 = sshll.u32 %s9, 4
      %s282 = int_to_ptr.hbm [resolvable:$true] %s281
      %284 = dma.vmem_to_hbm [thread:$0]  %s280, 128, %s282, [#allocation4]
    $region61: #{tpu_custom_call.1} parent=1 // pred_fallthru
      _
    // Predicated region
    $region62: #{tpu_custom_call.1} parent=1 // pred_check
      _
    $region63: #{tpu_custom_call.1} parent=1 // pred_check_branch
      %286 = sbr.rel (0) target = $region65
    $region64: #{tpu_custom_call.1} parent=1 // pred_region
      %288 = dma.done [#allocation4], 128
    $region65: #{tpu_custom_call.1} parent=1 // pred_fallthru
      _
    %289 = vsyncpa [#allocation3], 1
    %290 = vsyncpa [#allocation6], 1
    %291 = vsyncpa [#allocation9], 1
    %292 = vsyncpa [#allocation4], 1

</llo_original>
